<compile_context>
chip_gen: v7x
topology: tpu7x:2x2x1
jax: 0.10.0
libtpu: 0.0.40
codegen_flags: <defaults>
</compile_context>

<pallas_src>
import numpy as np
import jax
import jax.numpy as jnp
from jax import lax
from jax.experimental import pallas as pl
from jax.experimental.pallas import tpu as pltpu


# ----------------------------------------------------------------------------
# Sizes (toy stand-ins for the real module; chosen lane/sublane friendly)
# ----------------------------------------------------------------------------
GRID = 8      # projection raster (stand-in for Realistic_Projection resolution)
IMG = 16      # "224x224" target at small scale
EMBED = 128   # stand-in for CLIP embed_dim -- multiple of 128 => lane-dense
N_PTS = 64
VOCAB = 64
SEQ = 8
FEAT_IN = 3 * IMG * IMG   # 768 = 6*128, lane-dense contraction dim
BS = 8        # multiple of 8: sublane-aligned view split; 16 rows into the MXU


# ----------------------------------------------------------------------------
# Fused Pallas kernel: visual matmul (both views), text matmul, L2 norms,
# view fusion, scaled logits, cross-entropy(ignore_index=0).
# At these shapes everything is VMEM-resident, so no grid (single invocation).
# ----------------------------------------------------------------------------
def _fused_forward_kernel(scale_ref, ximg_ref, wv_ref, xtxt_ref, wt_ref,
                          logits_ref, loss_ref):
    # ---- encoder stand-ins: bf16 operands, f32 accumulation on the MXU ----
    # ximg: [2*bs, K] bf16 (view1 rows then view2 rows), wv: [K, D] bf16
    feats = jnp.dot(ximg_ref[...], wv_ref[...],
                    preferred_element_type=jnp.float32)          # [2*bs, D] f32
    tfeat = jnp.dot(xtxt_ref[...], wt_ref[...],
                    preferred_element_type=jnp.float32)          # [bs, D]   f32

    bs = tfeat.shape[0]
    eps = 1e-12  # guards zero rows (empty projected image)

    def l2_normalize(x):
        # rsqrt runs on the EUP slot instead of VPU sqrt + divide
        ssq = jnp.maximum(jnp.sum(x * x, axis=1, keepdims=True), eps)
        return x * lax.rsqrt(ssq)

    feats_n = l2_normalize(feats)            # normalize each view's features
    nt = l2_normalize(tfeat)

    # bs is a multiple of 8, so this split is sublane-aligned (no mid-vreg
    # slice / VMEM copy for the two-view fusion).
    img = feats_n[:bs] + feats_n[bs:]        # image_feat1 + image_feat2

    # Fold exp(0.2 * logit_scale) into the [bs, D] image features (small VPU
    # cost) instead of scaling the [bs, bs] MXU output on the writeback path.
    img = img * scale_ref[0]

    # logits = scale * image_feat @ text_feat.T   (NT dot_general; any nt
    # transpose the compiler emits rides the XLU slot under the MXU).
    logits = lax.dot_general(img, nt, (((1,), (1,)), ((), ())),
                             preferred_element_type=jnp.float32)  # [bs, bs]
    logits_ref[...] = logits

    # ---- CrossEntropyLoss(logits, arange(bs), ignore_index=0) ----
    rows = lax.broadcasted_iota(jnp.int32, (bs, bs), 0)
    cols = lax.broadcasted_iota(jnp.int32, (bs, bs), 1)
    diag = (rows == cols).astype(jnp.float32)

    m = jnp.max(logits, axis=1, keepdims=True)
    lse = m + jnp.log(jnp.sum(jnp.exp(logits - m), axis=1, keepdims=True))
    correct = jnp.sum(logits * diag, axis=1, keepdims=True)
    per_row = lse - correct                                      # (bs, 1)

    # labels = arange(bs); ignore_index=0  ==> row 0 is ignored
    row_idx = lax.broadcasted_iota(jnp.int32, (bs, 1), 0)
    valid = (row_idx != 0).astype(jnp.float32)
    num = jnp.sum(per_row * valid, keepdims=True)                # (1, 1)
    den = jnp.sum(valid, keepdims=True)                          # (1, 1)
    # TODO(synk): torch returns NaN when every target is ignored (bs == 1);
    # this clamp returns 0 instead (intentional divergence, bs >= 2 here).
    den = jnp.maximum(den, 1.0)
    loss_ref[...] = num / den                # exact divide (one scalar)
    # TODO(synk): loss could become an SMEM scalar output; kept as a VMEM
    # (1,1) tile — the masked vst is off the critical path at these shapes.


def pallas_fused_forward(scale, x_img, w_vis, x_txt, w_txt):
    """x_img: [2*bs, K] bf16 flattened images (both views), w_vis: [K, D] bf16,
    x_txt: [bs, E] bf16, w_txt: [E, D] bf16.  Returns (logits [bs,bs] f32,
    loss [1,1] f32)."""
    bs2, K = x_img.shape
    bs = bs2 // 2
    assert bs % 8 == 0, "bs must be a multiple of 8 (sublane-aligned)"
    assert w_vis.shape[0] == K
    D = w_vis.shape[1]
    assert x_txt.shape == (bs, w_txt.shape[0]) and w_txt.shape[1] == D
    for a in (x_img, w_vis, x_txt, w_txt):
        assert a.dtype == jnp.bfloat16, "pass bf16 operands (weights cast at init)"

    scale_arr = jnp.asarray(scale, jnp.float32).reshape(1)   # 1-D SMEM scalar

    # VMEM budget from the actual operand footprint (single un-gridded call,
    # no double buffering), with headroom for compiler temporaries.  Never
    # requests the full physical VMEM (64 MiB on v7x, 128 MiB on v5e/v6e).
    in_bytes = sum(int(a.size) * a.dtype.itemsize
                   for a in (x_img, w_vis, x_txt, w_txt))
    out_bytes = bs * bs * 4 + 8 * 128 * 4    # logits + padded (1,1) loss tile
    vmem_limit = int(min(16 << 20, max(8 << 20, 4 * (in_bytes + out_bytes))))

    vmem = pltpu.MemorySpace.VMEM
    return pl.pallas_call(
        _fused_forward_kernel,
        out_shape=(jax.ShapeDtypeStruct((bs, bs), jnp.float32),
                   jax.ShapeDtypeStruct((1, 1), jnp.float32)),
        in_specs=[pl.BlockSpec(memory_space=pltpu.MemorySpace.SMEM),
                  pl.BlockSpec(memory_space=vmem),
                  pl.BlockSpec(memory_space=vmem),
                  pl.BlockSpec(memory_space=vmem),
                  pl.BlockSpec(memory_space=vmem)],
        out_specs=(pl.BlockSpec(memory_space=vmem),
                   pl.BlockSpec(memory_space=vmem)),
        compiler_params=pltpu.CompilerParams(vmem_limit_bytes=vmem_limit),
    )(scale_arr, x_img, w_vis, x_txt, w_txt)


# ----------------------------------------------------------------------------
# Glue (plain JAX): projection and interpolation, reformulated without
# scatter/gather HLOs (vectorized one-hot max + interpolation-matrix matmuls).
# ----------------------------------------------------------------------------
def project_pc(pc, rot, grid_size):
    # TODO(synk): real Realistic_Projection uses grid pooling + Grid2Image blur
    # conv; simplified here to a rotation + orthographic max-depth projection,
    # expressed as a one-hot max (no serial scatter ops on TPU).
    B, N, _ = pc.shape
    pcr = jnp.einsum('bnc,cd->bnd', pc, rot)
    xi = jnp.clip(jnp.floor((pcr[..., 0] + 1.0) * 0.5 * (grid_size - 1) + 0.5),
                  0, grid_size - 1).astype(jnp.int32)
    yi = jnp.clip(jnp.floor((pcr[..., 1] + 1.0) * 0.5 * (grid_size - 1) + 0.5),
                  0, grid_size - 1).astype(jnp.int32)
    depth = (pcr[..., 2] + 1.0) * 0.5                          # [B, N]
    cell = yi * grid_size + xi                                  # [B, N]
    onehot = cell[..., None] == jnp.arange(grid_size * grid_size)[None, None, :]
    img = jnp.max(jnp.where(onehot, depth[..., None], 0.0), axis=1)  # [B, G*G]
    img = img.reshape(B, grid_size, grid_size)
    return jnp.repeat(img[:, None], 3, axis=1)                  # NCHW, 3 chans


def _bilinear_matrix(in_size, out_size):
    # torch F.interpolate(mode='bilinear', align_corners=True), as a matrix.
    src = (np.linspace(0.0, in_size - 1.0, out_size)
           if out_size > 1 else np.zeros((1,)))
    i0 = np.clip(np.floor(src).astype(np.int64), 0, in_size - 1)
    i1 = np.clip(i0 + 1, 0, in_size - 1)
    w1 = (src - i0).astype(np.float32)
    M = np.zeros((out_size, in_size), np.float32)
    M[np.arange(out_size), i0] += 1.0 - w1
    M[np.arange(out_size), i1] += w1
    return M


def _bicubic_matrix(in_size, out_size, a=-0.75):
    # torch F.interpolate(mode='bicubic', align_corners=True): cubic
    # convolution with A=-0.75 and border-clamped indices, as a matrix.
    src = (np.linspace(0.0, in_size - 1.0, out_size)
           if out_size > 1 else np.zeros((1,)))
    base = np.floor(src).astype(np.int64)
    M = np.zeros((out_size, in_size), np.float32)
    for k in (-1, 0, 1, 2):
        idx = np.clip(base + k, 0, in_size - 1)
        t = np.abs(src - (base + k))
        w = np.where(t <= 1.0, (a + 2) * t**3 - (a + 3) * t**2 + 1.0,
                     np.where(t < 2.0, a * t**3 - 5 * a * t**2 + 8 * a * t - 4 * a,
                              0.0))
        M[np.arange(out_size), idx] += w.astype(np.float32)
    return M


_BIL_MY = _bilinear_matrix(GRID, IMG)
_BIL_MX = _bilinear_matrix(GRID, IMG)
_CUB_MY = _bicubic_matrix(GRID, IMG)
_CUB_MX = _bicubic_matrix(GRID, IMG)


def resize_matmul(img, my, mx):
    # img: [B, C, H, W]; out[b,c] = My @ img[b,c] @ Mx.T  (two small matmuls)
    return jnp.einsum('oh,bchw,pw->bcop', my, img, mx)


def rot_z(theta):
    c, s = jnp.cos(theta), jnp.sin(theta)
    return jnp.array([[c, -s, 0.0], [s, c, 0.0], [0.0, 0.0, 1.0]], jnp.float32)


def init_params(key):
    k1, k2, k3 = jax.random.split(key, 3)
    return {
        'finalrot': rot_z(0.3),                  # nn.Parameter(finalRot)
        'finalrot1': rot_z(-0.2),                # nn.Parameter(finalRot)
        # Encoder stand-in weights stored in bf16 ONCE here, so the forward
        # wrapper never re-casts them (no extra HBM round-trip per step).
        'w_visual': (0.02 * jax.random.normal(k1, (FEAT_IN, EMBED),
                                              jnp.float32)).astype(jnp.bfloat16),
        'token_emb': 0.02 * jax.random.normal(k2, (VOCAB, EMBED), jnp.float32),
        'w_text': (0.02 * jax.random.normal(k3, (EMBED, EMBED),
                                            jnp.float32)).astype(jnp.bfloat16),
        'logit_scale': jnp.log(1.0 / 0.07).astype(jnp.float32),  # CLIP init
    }


@jax.jit
def pointclipv2_zs_forward(pc, text_id, params):
    bs = pc.shape[0]

    # get_img with rotation=[finalrot, finalrot1]  (simplified projection)
    images1 = project_pc(pc, params['finalrot'], GRID)
    images2 = project_pc(pc, params['finalrot1'], GRID)

    # F.interpolate stand-ins as interpolation-matrix matmuls (no gathers).
    images1 = resize_matmul(images1, _BIL_MY, _BIL_MX)   # bilinear, align_corners=True
    images2 = resize_matmul(images2, _CUB_MY, _CUB_MX)   # bicubic A=-0.75, align_corners=True

    # TODO(synk): CLIP ViT visual encoder replaced by a deterministic linear
    # projection; both views share one weight read / one MXU matmul by
    # concatenating along the batch axis.  Activations cast to bf16 here
    # (weights are already bf16 in params).
    x_img = jnp.concatenate(
        [images1.reshape(bs, -1), images2.reshape(bs, -1)],
        axis=0).astype(jnp.bfloat16)                              # [2*bs, K]

    # TODO(synk): CLIP text transformer replaced by token-embedding mean-pool
    # followed by a linear projection (done inside the fused kernel).
    tokens = params['token_emb'][jnp.squeeze(text_id, axis=1)]    # [bs, L, E]
    x_txt = jnp.mean(tokens, axis=1).astype(jnp.bfloat16)         # [bs, E]

    scale = jnp.exp(params['logit_scale'] * 0.2)
    logits, loss = pallas_fused_forward(scale, x_img, params['w_visual'],
                                        x_txt, params['w_text'])
    return logits, loss[0, 0]


if __name__ == "__main__":
    key = jax.random.PRNGKey(0)
    kp, kt, kparams = jax.random.split(key, 3)

    pc = jax.random.uniform(kp, (BS, N_PTS, 3), jnp.float32,
                            minval=-1.0, maxval=1.0)
    text_id = jax.random.randint(kt, (BS, 1, SEQ), 0, VOCAB, jnp.int32)
    params = init_params(kparams)

    logits, loss = pointclipv2_zs_forward(pc, text_id, params)
    jax.block_until_ready((logits, loss))

    assert logits.shape == (BS, BS)
    assert bool(jnp.isfinite(loss))
    assert bool(jnp.all(jnp.isfinite(logits)))
    print("KERNEL_OK")
</pallas_src>

<mosaic_0001>
module attributes {stable_mosaic.version = 11 : i64} {
  func.func @_fused_forward_kernel(%arg0: memref<1xf32, #tpu.memory_space<smem>>, %arg1: memref<16x768xbf16, #tpu.memory_space<vmem>>, %arg2: memref<768x128xbf16, #tpu.memory_space<vmem>>, %arg3: memref<8x128xbf16, #tpu.memory_space<vmem>>, %arg4: memref<128x128xbf16, #tpu.memory_space<vmem>>, %arg5: memref<8x8xf32, #tpu.memory_space<vmem>>, %arg6: memref<1x1xf32, #tpu.memory_space<vmem>>) attributes {dimension_semantics = [], scalar_prefetch = 0 : i64, scratch_operands = 0 : i64, tpu.core_type = #tpu.core_type<tc>} {
    %c0 = arith.constant 0 : index
    %c0_0 = arith.constant 0 : index
    %0 = vector.load %arg1[%c0, %c0_0] : memref<16x768xbf16, #tpu.memory_space<vmem>>, vector<16x768xbf16>
    %c0_1 = arith.constant 0 : index
    %c0_2 = arith.constant 0 : index
    %1 = vector.load %arg2[%c0_1, %c0_2] : memref<768x128xbf16, #tpu.memory_space<vmem>>, vector<768x128xbf16>
    %cst = arith.constant dense<0.000000e+00> : vector<16x128xf32>
    %2 = tpu.matmul %0, %1, %cst {dimension_numbers = #tpu.dot_dimension_numbers<[1], [0], [0], [1], [0, 0, 1, 1], [], []>} : vector<16x768xbf16>, vector<768x128xbf16>, vector<16x128xf32> -> vector<16x128xf32>
    %c0_3 = arith.constant 0 : index
    %c0_4 = arith.constant 0 : index
    %3 = vector.load %arg3[%c0_3, %c0_4] : memref<8x128xbf16, #tpu.memory_space<vmem>>, vector<8x128xbf16>
    %c0_5 = arith.constant 0 : index
    %c0_6 = arith.constant 0 : index
    %4 = vector.load %arg4[%c0_5, %c0_6] : memref<128x128xbf16, #tpu.memory_space<vmem>>, vector<128x128xbf16>
    %cst_7 = arith.constant dense<0.000000e+00> : vector<8x128xf32>
    %5 = tpu.matmul %3, %4, %cst_7 {dimension_numbers = #tpu.dot_dimension_numbers<[1], [0], [0], [1], [0, 0, 1, 1], [], []>} : vector<8x128xbf16>, vector<128x128xbf16>, vector<8x128xf32> -> vector<8x128xf32>
    %6 = arith.mulf %2, %2 : vector<16x128xf32>
    %cst_8 = arith.constant dense<0.000000e+00> : vector<16xf32>
    %7 = vector.multi_reduction <add>, %6, %cst_8 [1] : vector<16x128xf32> to vector<16xf32>
    %8 = vector.shape_cast %7 : vector<16xf32> to vector<16x1xf32>
    %cst_9 = arith.constant 9.99999996E-13 : f32
    %9 = vector.broadcast %cst_9 : f32 to vector<16x1xf32>
    %10 = arith.maximumf %8, %9 : vector<16x1xf32>
    %11 = math.rsqrt %10 : vector<16x1xf32>
    %12 = vector.broadcast %11 : vector<16x1xf32> to vector<16x128xf32>
    %13 = arith.mulf %2, %12 : vector<16x128xf32>
    %14 = arith.mulf %5, %5 : vector<8x128xf32>
    %cst_10 = arith.constant dense<0.000000e+00> : vector<8xf32>
    %15 = vector.multi_reduction <add>, %14, %cst_10 [1] : vector<8x128xf32> to vector<8xf32>
    %16 = vector.shape_cast %15 : vector<8xf32> to vector<8x1xf32>
    %cst_11 = arith.constant 9.99999996E-13 : f32
    %17 = vector.broadcast %cst_11 : f32 to vector<8x1xf32>
    %18 = arith.maximumf %16, %17 : vector<8x1xf32>
    %19 = math.rsqrt %18 : vector<8x1xf32>
    %20 = vector.broadcast %19 : vector<8x1xf32> to vector<8x128xf32>
    %21 = arith.mulf %5, %20 : vector<8x128xf32>
    %22 = vector.extract_strided_slice %13 {offsets = [0, 0], sizes = [8, 128], strides = [1, 1]} : vector<16x128xf32> to vector<8x128xf32>
    %23 = vector.extract_strided_slice %13 {offsets = [8, 0], sizes = [8, 128], strides = [1, 1]} : vector<16x128xf32> to vector<8x128xf32>
    %24 = arith.addf %22, %23 : vector<8x128xf32>
    %c0_12 = arith.constant 0 : index
    %25 = memref.load %arg0[%c0_12] : memref<1xf32, #tpu.memory_space<smem>>
    %26 = vector.broadcast %25 : f32 to vector<8x128xf32>
    %27 = arith.mulf %24, %26 : vector<8x128xf32>
    %cst_13 = arith.constant dense<0.000000e+00> : vector<8x8xf32>
    %28 = tpu.matmul %27, %21, %cst_13 {dimension_numbers = #tpu.dot_dimension_numbers<[1], [1], [0], [0], [0, 0, 1, 0], [], []>} : vector<8x128xf32>, vector<8x128xf32>, vector<8x8xf32> -> vector<8x8xf32>
    %c0_14 = arith.constant 0 : index
    %c0_15 = arith.constant 0 : index
    %29 = vector.load %arg5[%c0_14, %c0_15] : memref<8x8xf32, #tpu.memory_space<vmem>>, vector<8x8xf32>
    tpu.vector_store %arg5[%c0_14, %c0_15], %28 {strides = array<i32>} : memref<8x8xf32, #tpu.memory_space<vmem>>, vector<8x8xf32>,
    %30 = tpu.iota {dimensions = array<i32: 0>} : vector<8x8xi32>
    %31 = tpu.iota {dimensions = array<i32: 1>} : vector<8x8xi32>
    %32 = arith.cmpi eq, %30, %31 : vector<8x8xi32>
    %33 = arith.extui %32 : vector<8x8xi1> to vector<8x8xi32>
    %34 = arith.sitofp %33 : vector<8x8xi32> to vector<8x8xf32>
    %cst_16 = arith.constant dense<0xFF800000> : vector<8xf32>
    %35 = vector.multi_reduction <maximumf>, %28, %cst_16 [1] : vector<8x8xf32> to vector<8xf32>
    %36 = vector.shape_cast %35 : vector<8xf32> to vector<8x1xf32>
    %37 = vector.broadcast %36 : vector<8x1xf32> to vector<8x8xf32>
    %38 = arith.subf %28, %37 : vector<8x8xf32>
    %39 = math.exp %38 : vector<8x8xf32>
    %cst_17 = arith.constant dense<0.000000e+00> : vector<8xf32>
    %40 = vector.multi_reduction <add>, %39, %cst_17 [1] : vector<8x8xf32> to vector<8xf32>
    %41 = vector.shape_cast %40 : vector<8xf32> to vector<8x1xf32>
    %42 = math.log %41 : vector<8x1xf32>
    %43 = arith.addf %36, %42 : vector<8x1xf32>
    %44 = arith.mulf %28, %34 : vector<8x8xf32>
    %cst_18 = arith.constant dense<0.000000e+00> : vector<8xf32>
    %45 = vector.multi_reduction <add>, %44, %cst_18 [1] : vector<8x8xf32> to vector<8xf32>
    %46 = vector.shape_cast %45 : vector<8xf32> to vector<8x1xf32>
    %47 = arith.subf %43, %46 : vector<8x1xf32>
    %48 = tpu.iota {dimensions = array<i32: 0>} : vector<8x1xi32>
    %c0_i32 = arith.constant 0 : i32
    %49 = vector.broadcast %c0_i32 : i32 to vector<8x1xi32>
    %50 = arith.cmpi ne, %48, %49 : vector<8x1xi32>
    %51 = arith.extui %50 : vector<8x1xi1> to vector<8x1xi32>
    %52 = arith.sitofp %51 : vector<8x1xi32> to vector<8x1xf32>
    %53 = arith.mulf %47, %52 : vector<8x1xf32>
    %54 = vector.shape_cast %53 : vector<8x1xf32> to vector<1x8x1xf32>
    %cst_19 = arith.constant dense<0.000000e+00> : vector<1xf32>
    %55 = vector.multi_reduction <add>, %54, %cst_19 [1, 2] : vector<1x8x1xf32> to vector<1xf32>
    %56 = vector.shape_cast %55 : vector<1xf32> to vector<1x1x1xf32>
    %57 = vector.extract %56[0, 0, 0] : f32 from vector<1x1x1xf32>
    %58 = vector.broadcast %57 : f32 to vector<1x1xf32>
    %59 = vector.shape_cast %52 : vector<8x1xf32> to vector<1x8x1xf32>
    %cst_20 = arith.constant dense<0.000000e+00> : vector<1xf32>
    %60 = vector.multi_reduction <add>, %59, %cst_20 [1, 2] : vector<1x8x1xf32> to vector<1xf32>
    %61 = vector.shape_cast %60 : vector<1xf32> to vector<1x1x1xf32>
    %62 = vector.extract %61[0, 0, 0] : f32 from vector<1x1x1xf32>
    %63 = vector.broadcast %62 : f32 to vector<1x1xf32>
    %cst_21 = arith.constant 1.000000e+00 : f32
    %64 = vector.broadcast %cst_21 : f32 to vector<1x1xf32>
    %65 = arith.maximumf %63, %64 : vector<1x1xf32>
    %66 = arith.divf %58, %65 : vector<1x1xf32>
    %c0_22 = arith.constant 0 : index
    %c0_23 = arith.constant 0 : index
    %67 = vector.load %arg6[%c0_22, %c0_23] : memref<1x1xf32, #tpu.memory_space<vmem>>, vector<1x1xf32>
    tpu.vector_store %arg6[%c0_22, %c0_23], %66 {strides = array<i32>} : memref<1x1xf32, #tpu.memory_space<vmem>>, vector<1x1xf32>,
    return
  }
}

</mosaic_0001>

<llo_original>
// kernel: pointclipv2_zs_forward.1
$region0: #{pointclipv2_zs_forward.1}
  #allocation0 [shape = 'u32[]', space=smem, size = 0x4, offset = 0x4, fixed_abs, tag = 'smem constant byte address 0x4 - core index']
  #allocation1 [shape = 'u32[144,128]{1,0:T(1,128)}', space=vmem, size = 0x12000, scoped, tag = 'internal scratch']
  #allocation2 [shape = 'f32[1]{0:T(128)S(6)}', space=smem, size = 0x200, scoped, tag = 'scoped memory for pointclipv2_zs_forward.1']
  %s0 = inlined_call_operand.<no memory space> [shape: f32[1], index: 0, kind: input, shape index: {}]
  %s1 = inlined_call_operand.vmem [shape: bf16[16,768], index: 1, kind: input, shape index: {}]
  %s2 = inlined_call_operand.vmem [shape: bf16[768,128], index: 2, kind: input, shape index: {}]
  %s3 = inlined_call_operand.vmem [shape: bf16[8,128], index: 3, kind: input, shape index: {}]
  %s4 = inlined_call_operand.vmem [shape: bf16[128,128], index: 4, kind: input, shape index: {}]
  %s5 = inlined_call_operand.hbm [shape: f32[8,8], index: 5, kind: output, shape index: {0}]
  %s6 = inlined_call_operand.hbm [shape: f32[1,1], index: 6, kind: output, shape index: {1}]
  %7 = xla_tuple %s5, %s6
  %s8 = sld [smem:[#allocation0]]
  $region38: #{pointclipv2_zs_forward.1} parent=0
    _
  %s10 = ssub.s32 1, %s8
  %s11 = scalar_select 0, %s10, %s8
  %12 = sst [smem:[#allocation2]] %s0
  $region1: #{pointclipv2_zs_forward.1} parent=0
    #allocation3 [shape = 'u8[4096]{0}', space=vmem, size = 0x1000, scoped, tag = 'output window, operand 0, single buffered']
    #allocation4 [shape = 's32[1]{0}', space=sflag, size = 0x4, scoped, tag = 'scoped memory for pointclipv2_zs_forward.1']
    #allocation5 [shape = 'u8[512]{0}', space=vmem, size = 0x400, scoped, tag = 'output window, operand 1, single buffered']
    #allocation6 [shape = 's32[1]{0}', space=sflag, size = 0x4, scoped, tag = 'scoped memory for pointclipv2_zs_forward.1']
    %13 = vsyncpa [#allocation4], 0
    %14 = vsyncpa [#allocation6], 0
    // Predicated region
    $region2: #{pointclipv2_zs_forward.1} parent=1 // pred_check
      _
    $region3: #{pointclipv2_zs_forward.1} parent=1 // pred_check_branch
      %16 = sbr.rel (0) target = $region5
    $region4: #{pointclipv2_zs_forward.1} parent=1 // pred_region
      _
    $region5: #{pointclipv2_zs_forward.1} parent=1 // pred_fallthru
      _
    // Predicated region
    $region6: #{pointclipv2_zs_forward.1} parent=1 // pred_check
      _
    $region7: #{pointclipv2_zs_forward.1} parent=1 // pred_check_branch
      %18 = sbr.rel (0) target = $region9
    $region8: #{pointclipv2_zs_forward.1} parent=1 // pred_region
      _
    $region9: #{pointclipv2_zs_forward.1} parent=1 // pred_fallthru
      _
    // Predicated region
    $region10: #{pointclipv2_zs_forward.1} parent=1 // pred_check
      _
    $region11: #{pointclipv2_zs_forward.1} parent=1 // pred_check_branch
      %20 = sbr.rel (0) target = $region13
    $region12: #{pointclipv2_zs_forward.1} parent=1 // pred_region
      _
    $region13: #{pointclipv2_zs_forward.1} parent=1 // pred_fallthru
      _
    // Predicated region
    $region14: #{pointclipv2_zs_forward.1} parent=1 // pred_check
      _
    $region15: #{pointclipv2_zs_forward.1} parent=1 // pred_check_branch
      %22 = sbr.rel (0) target = $region17
    $region16: #{pointclipv2_zs_forward.1} parent=1 // pred_region
      _
    $region17: #{pointclipv2_zs_forward.1} parent=1 // pred_fallthru
      _
    // Predicated region
    $region18: #{pointclipv2_zs_forward.1} parent=1 // pred_check
      _
    $region19: #{pointclipv2_zs_forward.1} parent=1 // pred_check_branch
      %24 = sbr.rel (0) target = $region21
    $region20: #{pointclipv2_zs_forward.1} parent=1 // pred_region
      _
    $region21: #{pointclipv2_zs_forward.1} parent=1 // pred_fallthru
      _
    %v26 = vld [vmem:[%s1] sm:$0xff]
    %v27 = vld [vmem:[%s1 + $0x8] sm:$0xff]
    %v28 = vld [vmem:[%s1 + $0x10] sm:$0xff]
    %v29 = vld [vmem:[%s1 + $0x18] sm:$0xff]
    %v30 = vld [vmem:[%s1 + $0x20] sm:$0xff]
    %v31 = vld [vmem:[%s1 + $0x28] sm:$0xff]
    %v32 = vld [vmem:[%s2] sm:$0xf]
    %v33 = vld [vmem:[%s2 + $0x4] sm:$0xf]
    %v34 = vld [vmem:[%s2 + $0x8] sm:$0xf]
    %v35 = vld [vmem:[%s2 + $0xc] sm:$0xf]
    %v36 = vld [vmem:[%s2 + $0x10] sm:$0xf]
    %v37 = vld [vmem:[%s2 + $0x14] sm:$0xf]
    %v38 = vld [vmem:[%s2 + $0x18] sm:$0xf]
    %v39 = vld [vmem:[%s2 + $0x1c] sm:$0xf]
    %v40 = vld [vmem:[%s2 + $0x20] sm:$0xf]
    %v41 = vld [vmem:[%s2 + $0x24] sm:$0xf]
    %v42 = vld [vmem:[%s2 + $0x28] sm:$0xf]
    %v43 = vld [vmem:[%s2 + $0x2c] sm:$0xf]
    %v44 = vld [vmem:[%s2 + $0x30] sm:$0xf]
    %v45 = vld [vmem:[%s2 + $0x34] sm:$0xf]
    %v46 = vld [vmem:[%s2 + $0x38] sm:$0xf]
    %v47 = vld [vmem:[%s2 + $0x3c] sm:$0xf]
    %v48 = vld [vmem:[%s2 + $0x40] sm:$0xf]
    %v49 = vld [vmem:[%s2 + $0x44] sm:$0xf]
    %v50 = vld [vmem:[%s2 + $0x48] sm:$0xf]
    %v51 = vld [vmem:[%s2 + $0x4c] sm:$0xf]
    %v52 = vld [vmem:[%s2 + $0x50] sm:$0xf]
    %v53 = vld [vmem:[%s2 + $0x54] sm:$0xf]
    %v54 = vld [vmem:[%s2 + $0x58] sm:$0xf]
    %v55 = vld [vmem:[%s2 + $0x5c] sm:$0xf]
    %v56 = vld [vmem:[%s2 + $0x60] sm:$0xf]
    %v57 = vld [vmem:[%s2 + $0x64] sm:$0xf]
    %v58 = vld [vmem:[%s2 + $0x68] sm:$0xf]
    %v59 = vld [vmem:[%s2 + $0x6c] sm:$0xf]
    %v60 = vld [vmem:[%s2 + $0x70] sm:$0xf]
    %v61 = vld [vmem:[%s2 + $0x74] sm:$0xf]
    %v62 = vld [vmem:[%s2 + $0x78] sm:$0xf]
    %v63 = vld [vmem:[%s2 + $0x7c] sm:$0xf]
    %v64 = vld [vmem:[%s2 + $0x80] sm:$0xf]
    %v65 = vld [vmem:[%s2 + $0x84] sm:$0xf]
    %v66 = vld [vmem:[%s2 + $0x88] sm:$0xf]
    %v67 = vld [vmem:[%s2 + $0x8c] sm:$0xf]
    %v68 = vld [vmem:[%s2 + $0x90] sm:$0xf]
    %v69 = vld [vmem:[%s2 + $0x94] sm:$0xf]
    %v70 = vld [vmem:[%s2 + $0x98] sm:$0xf]
    %v71 = vld [vmem:[%s2 + $0x9c] sm:$0xf]
    %v72 = vld [vmem:[%s2 + $0xa0] sm:$0xf]
    %v73 = vld [vmem:[%s2 + $0xa4] sm:$0xf]
    %v74 = vld [vmem:[%s2 + $0xa8] sm:$0xf]
    %v75 = vld [vmem:[%s2 + $0xac] sm:$0xf]
    %v76 = vld [vmem:[%s2 + $0xb0] sm:$0xf]
    %v77 = vld [vmem:[%s2 + $0xb4] sm:$0xf]
    %v78 = vld [vmem:[%s2 + $0xb8] sm:$0xf]
    %v79 = vld [vmem:[%s2 + $0xbc] sm:$0xf]
    %v80 = vld [vmem:[%s2 + $0xc0] sm:$0xf]
    %v81 = vld [vmem:[%s2 + $0xc4] sm:$0xf]
    %v82 = vld [vmem:[%s2 + $0xc8] sm:$0xf]
    %v83 = vld [vmem:[%s2 + $0xcc] sm:$0xf]
    %v84 = vld [vmem:[%s2 + $0xd0] sm:$0xf]
    %v85 = vld [vmem:[%s2 + $0xd4] sm:$0xf]
    %v86 = vld [vmem:[%s2 + $0xd8] sm:$0xf]
    %v87 = vld [vmem:[%s2 + $0xdc] sm:$0xf]
    %v88 = vld [vmem:[%s2 + $0xe0] sm:$0xf]
    %v89 = vld [vmem:[%s2 + $0xe4] sm:$0xf]
    %v90 = vld [vmem:[%s2 + $0xe8] sm:$0xf]
    %v91 = vld [vmem:[%s2 + $0xec] sm:$0xf]
    %v92 = vld [vmem:[%s2 + $0xf0] sm:$0xf]
    %v93 = vld [vmem:[%s2 + $0xf4] sm:$0xf]
    %v94 = vld [vmem:[%s2 + $0xf8] sm:$0xf]
    %v95 = vld [vmem:[%s2 + $0xfc] sm:$0xf]
    %v96 = vld [vmem:[%s2 + $0x100] sm:$0xf]
    %v97 = vld [vmem:[%s2 + $0x104] sm:$0xf]
    %v98 = vld [vmem:[%s2 + $0x108] sm:$0xf]
    %v99 = vld [vmem:[%s2 + $0x10c] sm:$0xf]
    %v100 = vld [vmem:[%s2 + $0x110] sm:$0xf]
    %v101 = vld [vmem:[%s2 + $0x114] sm:$0xf]
    %v102 = vld [vmem:[%s2 + $0x118] sm:$0xf]
    %v103 = vld [vmem:[%s2 + $0x11c] sm:$0xf]
    %v104 = vld [vmem:[%s2 + $0x120] sm:$0xf]
    %v105 = vld [vmem:[%s2 + $0x124] sm:$0xf]
    %v106 = vld [vmem:[%s2 + $0x128] sm:$0xf]
    %v107 = vld [vmem:[%s2 + $0x12c] sm:$0xf]
    %v108 = vld [vmem:[%s2 + $0x130] sm:$0xf]
    %v109 = vld [vmem:[%s2 + $0x134] sm:$0xf]
    %v110 = vld [vmem:[%s2 + $0x138] sm:$0xf]
    %v111 = vld [vmem:[%s2 + $0x13c] sm:$0xf]
    %v112 = vld [vmem:[%s2 + $0x140] sm:$0xf]
    %v113 = vld [vmem:[%s2 + $0x144] sm:$0xf]
    %v114 = vld [vmem:[%s2 + $0x148] sm:$0xf]
    %v115 = vld [vmem:[%s2 + $0x14c] sm:$0xf]
    %v116 = vld [vmem:[%s2 + $0x150] sm:$0xf]
    %v117 = vld [vmem:[%s2 + $0x154] sm:$0xf]
    %v118 = vld [vmem:[%s2 + $0x158] sm:$0xf]
    %v119 = vld [vmem:[%s2 + $0x15c] sm:$0xf]
    %v120 = vld [vmem:[%s2 + $0x160] sm:$0xf]
    %v121 = vld [vmem:[%s2 + $0x164] sm:$0xf]
    %v122 = vld [vmem:[%s2 + $0x168] sm:$0xf]
    %v123 = vld [vmem:[%s2 + $0x16c] sm:$0xf]
    %v124 = vld [vmem:[%s2 + $0x170] sm:$0xf]
    %v125 = vld [vmem:[%s2 + $0x174] sm:$0xf]
    %v126 = vld [vmem:[%s2 + $0x178] sm:$0xf]
    %v127 = vld [vmem:[%s2 + $0x17c] sm:$0xf]
    %v134 = vunpack.c.l.b16 %v26
    %v135 = vunpack.c.h.b16 %v26
    %v136 = vunpack.c.l.b16 %v27
    %v137 = vunpack.c.h.b16 %v27
    %v138 = vunpack.c.l.b16 %v28
    %v139 = vunpack.c.h.b16 %v28
    %v140 = vunpack.c.l.b16 %v29
    %v141 = vunpack.c.h.b16 %v29
    %v142 = vunpack.c.l.b16 %v30
    %v143 = vunpack.c.h.b16 %v30
    %v144 = vunpack.c.l.b16 %v31
    %v145 = vunpack.c.h.b16 %v31
    %v146 = vpack.c.b16 %v140, %v134
    %v147 = vpack.c.b16 %v141, %v135
    %v148 = vpack.c.b16 %v142, %v136
    %v149 = vpack.c.b16 %v143, %v137
    %v150 = vpack.c.b16 %v144, %v138
    %v151 = vpack.c.b16 %v145, %v139
    %v254 = vunpack.c.l.b16 %v32
    %v255 = vunpack.c.l.b16 %v33
    %v256 = vunpack.c.l.b16 %v34
    %v257 = vunpack.c.l.b16 %v35
    %v258 = vunpack.c.l.b16 %v36
    %v259 = vunpack.c.l.b16 %v37
    %v260 = vunpack.c.l.b16 %v38
    %v261 = vunpack.c.l.b16 %v39
    %v262 = vunpack.c.l.b16 %v40
    %v263 = vunpack.c.l.b16 %v41
    %v264 = vunpack.c.l.b16 %v42
    %v265 = vunpack.c.l.b16 %v43
    %v266 = vunpack.c.l.b16 %v44
    %v267 = vunpack.c.l.b16 %v45
    %v268 = vunpack.c.l.b16 %v46
    %v269 = vunpack.c.l.b16 %v47
    %v270 = vunpack.c.l.b16 %v48
    %v271 = vunpack.c.l.b16 %v49
    %v272 = vunpack.c.l.b16 %v50
    %v273 = vunpack.c.l.b16 %v51
    %v274 = vunpack.c.l.b16 %v52
    %v275 = vunpack.c.l.b16 %v53
    %v276 = vunpack.c.l.b16 %v54
    %v277 = vunpack.c.l.b16 %v55
    %v278 = vunpack.c.l.b16 %v56
    %v279 = vunpack.c.l.b16 %v57
    %v280 = vunpack.c.l.b16 %v58
    %v281 = vunpack.c.l.b16 %v59
    %v282 = vunpack.c.l.b16 %v60
    %v283 = vunpack.c.l.b16 %v61
    %v284 = vunpack.c.l.b16 %v62
    %v285 = vunpack.c.l.b16 %v63
    %v286 = vunpack.c.l.b16 %v64
    %v287 = vunpack.c.l.b16 %v65
    %v288 = vunpack.c.l.b16 %v66
    %v289 = vunpack.c.l.b16 %v67
    %v290 = vunpack.c.l.b16 %v68
    %v291 = vunpack.c.l.b16 %v69
    %v292 = vunpack.c.l.b16 %v70
    %v293 = vunpack.c.l.b16 %v71
    %v294 = vunpack.c.l.b16 %v72
    %v295 = vunpack.c.l.b16 %v73
    %v296 = vunpack.c.l.b16 %v74
    %v297 = vunpack.c.l.b16 %v75
    %v298 = vunpack.c.l.b16 %v76
    %v299 = vunpack.c.l.b16 %v77
    %v300 = vunpack.c.l.b16 %v78
    %v301 = vunpack.c.l.b16 %v79
    %v302 = vunpack.c.l.b16 %v80
    %v303 = vunpack.c.l.b16 %v81
    %v304 = vunpack.c.l.b16 %v82
    %v305 = vunpack.c.l.b16 %v83
    %v306 = vunpack.c.l.b16 %v84
    %v307 = vunpack.c.l.b16 %v85
    %v308 = vunpack.c.l.b16 %v86
    %v309 = vunpack.c.l.b16 %v87
    %v310 = vunpack.c.l.b16 %v88
    %v311 = vunpack.c.l.b16 %v89
    %v312 = vunpack.c.l.b16 %v90
    %v313 = vunpack.c.l.b16 %v91
    %v314 = vunpack.c.l.b16 %v92
    %v315 = vunpack.c.l.b16 %v93
    %v316 = vunpack.c.l.b16 %v94
    %v317 = vunpack.c.l.b16 %v95
    %v318 = vunpack.c.l.b16 %v96
    %v319 = vunpack.c.l.b16 %v97
    %v320 = vunpack.c.l.b16 %v98
    %v321 = vunpack.c.l.b16 %v99
    %v322 = vunpack.c.l.b16 %v100
    %v323 = vunpack.c.l.b16 %v101
    %v324 = vunpack.c.l.b16 %v102
    %v325 = vunpack.c.l.b16 %v103
    %v326 = vunpack.c.l.b16 %v104
    %v327 = vunpack.c.l.b16 %v105
    %v328 = vunpack.c.l.b16 %v106
    %v329 = vunpack.c.l.b16 %v107
    %v330 = vunpack.c.l.b16 %v108
    %v331 = vunpack.c.l.b16 %v109
    %v332 = vunpack.c.l.b16 %v110
    %v333 = vunpack.c.l.b16 %v111
    %v334 = vunpack.c.l.b16 %v112
    %v335 = vunpack.c.l.b16 %v113
    %v336 = vunpack.c.l.b16 %v114
    %v337 = vunpack.c.l.b16 %v115
    %v338 = vunpack.c.l.b16 %v116
    %v339 = vunpack.c.l.b16 %v117
    %v340 = vunpack.c.l.b16 %v118
    %v341 = vunpack.c.l.b16 %v119
    %v342 = vunpack.c.l.b16 %v120
    %v343 = vunpack.c.l.b16 %v121
    %v344 = vunpack.c.l.b16 %v122
    %v345 = vunpack.c.l.b16 %v123
    %v346 = vunpack.c.l.b16 %v124
    %v347 = vunpack.c.l.b16 %v125
    %v348 = vunpack.c.l.b16 %v126
    %v349 = vunpack.c.l.b16 %v127
    %v350 = vpack.c.b16 %v255, %v254
    %v351 = vpack.c.b16 %v257, %v256
    %v352 = vpack.c.b16 %v259, %v258
    %v353 = vpack.c.b16 %v261, %v260
    %v354 = vpack.c.b16 %v263, %v262
    %v355 = vpack.c.b16 %v265, %v264
    %v356 = vpack.c.b16 %v267, %v266
    %v357 = vpack.c.b16 %v269, %v268
    %v358 = vpack.c.b16 %v271, %v270
    %v359 = vpack.c.b16 %v273, %v272
    %v360 = vpack.c.b16 %v275, %v274
    %v361 = vpack.c.b16 %v277, %v276
    %v362 = vpack.c.b16 %v279, %v278
    %v363 = vpack.c.b16 %v281, %v280
    %v364 = vpack.c.b16 %v283, %v282
    %v365 = vpack.c.b16 %v285, %v284
    %v366 = vpack.c.b16 %v287, %v286
    %v367 = vpack.c.b16 %v289, %v288
    %v368 = vpack.c.b16 %v291, %v290
    %v369 = vpack.c.b16 %v293, %v292
    %v370 = vpack.c.b16 %v295, %v294
    %v371 = vpack.c.b16 %v297, %v296
    %v372 = vpack.c.b16 %v299, %v298
    %v373 = vpack.c.b16 %v301, %v300
    %v374 = vpack.c.b16 %v303, %v302
    %v375 = vpack.c.b16 %v305, %v304
    %v376 = vpack.c.b16 %v307, %v306
    %v377 = vpack.c.b16 %v309, %v308
    %v378 = vpack.c.b16 %v311, %v310
    %v379 = vpack.c.b16 %v313, %v312
    %v380 = vpack.c.b16 %v315, %v314
    %v381 = vpack.c.b16 %v317, %v316
    %v382 = vpack.c.b16 %v319, %v318
    %v383 = vpack.c.b16 %v321, %v320
    %v384 = vpack.c.b16 %v323, %v322
    %v385 = vpack.c.b16 %v325, %v324
    %v386 = vpack.c.b16 %v327, %v326
    %v387 = vpack.c.b16 %v329, %v328
    %v388 = vpack.c.b16 %v331, %v330
    %v389 = vpack.c.b16 %v333, %v332
    %v390 = vpack.c.b16 %v335, %v334
    %v391 = vpack.c.b16 %v337, %v336
    %v392 = vpack.c.b16 %v339, %v338
    %v393 = vpack.c.b16 %v341, %v340
    %v394 = vpack.c.b16 %v343, %v342
    %v395 = vpack.c.b16 %v345, %v344
    %v396 = vpack.c.b16 %v347, %v346
    %v397 = vpack.c.b16 %v349, %v348
    %446 = vmatprep.subr.bf16.mxu0 0
    %447 = vmatpush1.bf16.msra.mxu0 %v350
    %448 = vmatprep.subr.bf16.mxu0 0
    %449 = vmatpush1.bf16.msra.mxu0 %v351
    %450 = vmatprep.subr.bf16.mxu0 0
    %451 = vmatpush1.bf16.msra.mxu0 %v352
    %452 = vmatprep.subr.bf16.mxu0 0
    %453 = vmatpush1.bf16.msra.mxu0 %v353
    %454 = vmatprep.subr.bf16.mxu0 0
    %455 = vmatpush1.bf16.msra.mxu0 %v354
    %456 = vmatprep.subr.bf16.mxu0 0
    %457 = vmatpush1.bf16.msra.mxu0 %v355
    %458 = vmatprep.subr.bf16.mxu0 0
    %459 = vmatpush1.bf16.msra.mxu0 %v356
    %460 = vmatprep.subr.bf16.mxu0 0
    %461 = vmatpush1.bf16.msra.mxu0 %v357
    %462 = vmatprep.subr.bf16.mxu0 0
    %463 = vmatpush1.bf16.msra.mxu0 %v358
    %464 = vmatprep.subr.bf16.mxu0 0
    %465 = vmatpush1.bf16.msra.mxu0 %v359
    %466 = vmatprep.subr.bf16.mxu0 0
    %467 = vmatpush1.bf16.msra.mxu0 %v360
    %468 = vmatprep.subr.bf16.mxu0 0
    %469 = vmatpush1.bf16.msra.mxu0 %v361
    %470 = vmatprep.subr.bf16.mxu0 0
    %471 = vmatpush1.bf16.msra.mxu0 %v362
    %472 = vmatprep.subr.bf16.mxu0 0
    %473 = vmatpush1.bf16.msra.mxu0 %v363
    %474 = vmatprep.subr.bf16.mxu0 0
    %475 = vmatpush1.bf16.msra.mxu0 %v364
    %476 = vmatprep.subr.bf16.mxu0 0
    %477 = vmatpush1.bf16.msra.mxu0 %v365
    %478 = vmatprep.mubr.bf16.mxu0 %v147
    %479 = vmatmul.mubr.bf16.gmra.mrb[0].mxu0 %v146
    %v480 = vpop.f32.mrb[0].mxu0
    %v481 = vadd.f32 0.0, %v480
    %v482 = vpop.f32.mrb[0].mxu0
    %v483 = vpop.f32.mrb[0].mxu0
    %v484 = vadd.f32 0.0, %v483
    %v485 = vpop.f32.mrb[0].mxu0
    %486 = vdwg.mxu0
    %487 = vmatprep.subr.bf16.mxu0 0
    %488 = vmatpush1.bf16.msra.mxu0 %v366
    %489 = vmatprep.subr.bf16.mxu0 0
    %490 = vmatpush1.bf16.msra.mxu0 %v367
    %491 = vmatprep.subr.bf16.mxu0 0
    %492 = vmatpush1.bf16.msra.mxu0 %v368
    %493 = vmatprep.subr.bf16.mxu0 0
    %494 = vmatpush1.bf16.msra.mxu0 %v369
    %495 = vmatprep.subr.bf16.mxu0 0
    %496 = vmatpush1.bf16.msra.mxu0 %v370
    %497 = vmatprep.subr.bf16.mxu0 0
    %498 = vmatpush1.bf16.msra.mxu0 %v371
    %499 = vmatprep.subr.bf16.mxu0 0
    %500 = vmatpush1.bf16.msra.mxu0 %v372
    %501 = vmatprep.subr.bf16.mxu0 0
    %502 = vmatpush1.bf16.msra.mxu0 %v373
    %503 = vmatprep.subr.bf16.mxu0 0
    %504 = vmatpush1.bf16.msra.mxu0 %v374
    %505 = vmatprep.subr.bf16.mxu0 0
    %506 = vmatpush1.bf16.msra.mxu0 %v375
    %507 = vmatprep.subr.bf16.mxu0 0
    %508 = vmatpush1.bf16.msra.mxu0 %v376
    %509 = vmatprep.subr.bf16.mxu0 0
    %510 = vmatpush1.bf16.msra.mxu0 %v377
    %511 = vmatprep.subr.bf16.mxu0 0
    %512 = vmatpush1.bf16.msra.mxu0 %v378
    %513 = vmatprep.subr.bf16.mxu0 0
    %514 = vmatpush1.bf16.msra.mxu0 %v379
    %515 = vmatprep.subr.bf16.mxu0 0
    %516 = vmatpush1.bf16.msra.mxu0 %v380
    %517 = vmatprep.subr.bf16.mxu0 0
    %518 = vmatpush1.bf16.msra.mxu0 %v381
    %519 = vmatprep.mubr.bf16.mxu0 %v149
    %520 = vmatmul.mubr.bf16.gmra.mrb[0].mxu0 %v148
    %v521 = vpop.f32.mrb[0].mxu0
    %v522 = vadd.f32 %v481, %v521
    %v523 = vpop.f32.mrb[0].mxu0
    %v524 = vpop.f32.mrb[0].mxu0
    %v525 = vadd.f32 %v484, %v524
    %v526 = vpop.f32.mrb[0].mxu0
    %527 = vdwg.mxu0
    %528 = vmatprep.subr.bf16.mxu0 0
    %529 = vmatpush1.bf16.msra.mxu0 %v382
    %530 = vmatprep.subr.bf16.mxu0 0
    %531 = vmatpush1.bf16.msra.mxu0 %v383
    %532 = vmatprep.subr.bf16.mxu0 0
    %533 = vmatpush1.bf16.msra.mxu0 %v384
    %534 = vmatprep.subr.bf16.mxu0 0
    %535 = vmatpush1.bf16.msra.mxu0 %v385
    %536 = vmatprep.subr.bf16.mxu0 0
    %537 = vmatpush1.bf16.msra.mxu0 %v386
    %538 = vmatprep.subr.bf16.mxu0 0
    %539 = vmatpush1.bf16.msra.mxu0 %v387
    %540 = vmatprep.subr.bf16.mxu0 0
    %541 = vmatpush1.bf16.msra.mxu0 %v388
    %542 = vmatprep.subr.bf16.mxu0 0
    %543 = vmatpush1.bf16.msra.mxu0 %v389
    %544 = vmatprep.subr.bf16.mxu0 0
    %545 = vmatpush1.bf16.msra.mxu0 %v390
    %546 = vmatprep.subr.bf16.mxu0 0
    %547 = vmatpush1.bf16.msra.mxu0 %v391
    %548 = vmatprep.subr.bf16.mxu0 0
    %549 = vmatpush1.bf16.msra.mxu0 %v392
    %550 = vmatprep.subr.bf16.mxu0 0
    %551 = vmatpush1.bf16.msra.mxu0 %v393
    %552 = vmatprep.subr.bf16.mxu0 0
    %553 = vmatpush1.bf16.msra.mxu0 %v394
    %554 = vmatprep.subr.bf16.mxu0 0
    %555 = vmatpush1.bf16.msra.mxu0 %v395
    %556 = vmatprep.subr.bf16.mxu0 0
    %557 = vmatpush1.bf16.msra.mxu0 %v396
    %558 = vmatprep.subr.bf16.mxu0 0
    %559 = vmatpush1.bf16.msra.mxu0 %v397
    %560 = vmatprep.mubr.bf16.mxu0 %v151
    %561 = vmatmul.mubr.bf16.gmra.mrb[0].mxu0 %v150
    %v562 = vpop.f32.mrb[0].mxu0
    %v563 = vadd.f32 %v522, %v562
    %v564 = vpop.f32.mrb[0].mxu0
    %v565 = vpop.f32.mrb[0].mxu0
    %v566 = vadd.f32 %v525, %v565
    %v567 = vpop.f32.mrb[0].mxu0
    %568 = vdwg.mxu0
    %v569 = vld [vmem:[%s3] sm:$0xf]
    %v570 = vld [vmem:[%s4] sm:$0xf]
    %v571 = vld [vmem:[%s4 + $0x4] sm:$0xf]
    %v572 = vld [vmem:[%s4 + $0x8] sm:$0xf]
    %v573 = vld [vmem:[%s4 + $0xc] sm:$0xf]
    %v574 = vld [vmem:[%s4 + $0x10] sm:$0xf]
    %v575 = vld [vmem:[%s4 + $0x14] sm:$0xf]
    %v576 = vld [vmem:[%s4 + $0x18] sm:$0xf]
    %v577 = vld [vmem:[%s4 + $0x1c] sm:$0xf]
    %v578 = vld [vmem:[%s4 + $0x20] sm:$0xf]
    %v579 = vld [vmem:[%s4 + $0x24] sm:$0xf]
    %v580 = vld [vmem:[%s4 + $0x28] sm:$0xf]
    %v581 = vld [vmem:[%s4 + $0x2c] sm:$0xf]
    %v582 = vld [vmem:[%s4 + $0x30] sm:$0xf]
    %v583 = vld [vmem:[%s4 + $0x34] sm:$0xf]
    %v584 = vld [vmem:[%s4 + $0x38] sm:$0xf]
    %v585 = vld [vmem:[%s4 + $0x3c] sm:$0xf]
    %v602 = vunpack.c.l.b16 %v570
    %v603 = vunpack.c.l.b16 %v571
    %v604 = vunpack.c.l.b16 %v572
    %v605 = vunpack.c.l.b16 %v573
    %v606 = vunpack.c.l.b16 %v574
    %v607 = vunpack.c.l.b16 %v575
    %v608 = vunpack.c.l.b16 %v576
    %v609 = vunpack.c.l.b16 %v577
    %v610 = vunpack.c.l.b16 %v578
    %v611 = vunpack.c.l.b16 %v579
    %v612 = vunpack.c.l.b16 %v580
    %v613 = vunpack.c.l.b16 %v581
    %v614 = vunpack.c.l.b16 %v582
    %v615 = vunpack.c.l.b16 %v583
    %v616 = vunpack.c.l.b16 %v584
    %v617 = vunpack.c.l.b16 %v585
    %v618 = vpack.c.b16 %v603, %v602
    %v619 = vpack.c.b16 %v605, %v604
    %v620 = vpack.c.b16 %v607, %v606
    %v621 = vpack.c.b16 %v609, %v608
    %v622 = vpack.c.b16 %v611, %v610
    %v623 = vpack.c.b16 %v613, %v612
    %v624 = vpack.c.b16 %v615, %v614
    %v625 = vpack.c.b16 %v617, %v616
    %634 = vmatprep.subr.bf16.mxu0 0
    %635 = vmatpush1.bf16.msra.mxu0 %v618
    %636 = vmatprep.subr.bf16.mxu0 0
    %637 = vmatpush1.bf16.msra.mxu0 %v619
    %638 = vmatprep.subr.bf16.mxu0 0
    %639 = vmatpush1.bf16.msra.mxu0 %v620
    %640 = vmatprep.subr.bf16.mxu0 0
    %641 = vmatpush1.bf16.msra.mxu0 %v621
    %642 = vmatprep.subr.bf16.mxu0 0
    %643 = vmatpush1.bf16.msra.mxu0 %v622
    %644 = vmatprep.subr.bf16.mxu0 0
    %645 = vmatpush1.bf16.msra.mxu0 %v623
    %646 = vmatprep.subr.bf16.mxu0 0
    %647 = vmatpush1.bf16.msra.mxu0 %v624
    %648 = vmatprep.subr.bf16.mxu0 0
    %649 = vmatpush1.bf16.msra.mxu0 %v625
    %650 = vmatprep.subr.bf16.mxu0 0
    %651 = vmatpush1.bf16.msra.mxu0 0
    %652 = vmatprep.subr.bf16.mxu0 0
    %653 = vmatpush1.bf16.msra.mxu0 0
    %654 = vmatprep.subr.bf16.mxu0 0
    %655 = vmatpush1.bf16.msra.mxu0 0
    %656 = vmatprep.subr.bf16.mxu0 0
    %657 = vmatpush1.bf16.msra.mxu0 0
    %658 = vmatprep.subr.bf16.mxu0 0
    %659 = vmatpush1.bf16.msra.mxu0 0
    %660 = vmatprep.subr.bf16.mxu0 0
    %661 = vmatpush1.bf16.msra.mxu0 0
    %662 = vmatprep.subr.bf16.mxu0 0
    %663 = vmatpush1.bf16.msra.mxu0 0
    %664 = vmatprep.subr.bf16.mxu0 0
    %665 = vmatpush1.bf16.msra.mxu0 0
    %666 = vmatprep.mubr.bf16.mxu0 0
    %667 = vmatmul.mubr.bf16.gmra.mrb[0].mxu0 %v569
    %v668 = vpop.f32.mrb[0].mxu0
    %v669 = vadd.f32 0.0, %v668
    %v670 = vpop.f32.mrb[0].mxu0
    %v671 = vpop.f32.mrb[0].mxu0
    %v672 = vpop.f32.mrb[0].mxu0
    %673 = vdwg.mxu0
    %v674 = vmul.f32 %v563, %v563
    %v675 = vmul.f32 %v566, %v566
    %676 = vadd.xlane.f32.xlu0 %v674
    %v677 = vpop.xlane.xlu0 %676
    %678 = vadd.xlane.f32.xlu0 %v675
    %v679 = vpop.xlane.xlu0 %678
    %v680 = vmax.f32 %v677, 1e-12
    %v681 = vmax.f32 %v679, 1e-12
    %v682 = vrsqrt.pop %v680
    %v683 = vrsqrt.pop %v681
    %v684 = vmul.f32 %v563, %v682
    %v685 = vmul.f32 %v566, %v683
    %v686 = vmul.f32 %v669, %v669
    %687 = vadd.xlane.f32.xlu0 %v686
    %v688 = vpop.xlane.xlu0 %687
    %v689 = vmax.f32 %v688, 1e-12
    %v690 = vrsqrt.pop %v689
    %v691 = vmul.f32 %v669, %v690
    %v692 = vadd.f32 %v684, %v685
    %s693 = sld [smem:[#allocation2]]
    %v694 = vstv %s693
    %v695 = vmul.f32 %v692, %v694
    %696 = vmatprep.subr.mxu0 0.0
    %697 = vmatpush1.xpose.msra.mxu0 %v691
    %698 = vmatprep.subr.mxu0 0.0
    %699 = vmatpush1.xpose.msra.mxu0 0.0
    %700 = vmatprep.subr.mxu0 0.0
    %701 = vmatpush1.xpose.msra.mxu0 0.0
    %702 = vmatprep.subr.mxu0 0.0
    %703 = vmatpush1.xpose.msra.mxu0 0.0
    %704 = vmatprep.subr.mxu0 0.0
    %705 = vmatpush1.xpose.msra.mxu0 0.0
    %706 = vmatprep.subr.mxu0 0.0
    %707 = vmatpush1.xpose.msra.mxu0 0.0
    %708 = vmatprep.subr.mxu0 0.0
    %709 = vmatpush1.xpose.msra.mxu0 0.0
    %710 = vmatprep.subr.mxu0 0.0
    %711 = vmatpush1.xpose.msra.mxu0 0.0
    %712 = vmatprep.subr.mxu0 0.0
    %713 = vmatpush1.xpose.msra.mxu0 0.0
    %714 = vmatprep.subr.mxu0 0.0
    %715 = vmatpush1.xpose.msra.mxu0 0.0
    %716 = vmatprep.subr.mxu0 0.0
    %717 = vmatpush1.xpose.msra.mxu0 0.0
    %718 = vmatprep.subr.mxu0 0.0
    %719 = vmatpush1.xpose.msra.mxu0 0.0
    %720 = vmatprep.subr.mxu0 0.0
    %721 = vmatpush1.xpose.msra.mxu0 0.0
    %722 = vmatprep.subr.mxu0 0.0
    %723 = vmatpush1.xpose.msra.mxu0 0.0
    %724 = vmatprep.subr.mxu0 0.0
    %725 = vmatpush1.xpose.msra.mxu0 0.0
    %726 = vmatprep.subr.mxu0 0.0
    %727 = vmatpush1.xpose.msra.mxu0 0.0
    %728 = vmatprep.subr.mxu0 0.0
    %729 = vmatpush1.xpose.msra.mxu0 0.0
    %730 = vmatprep.subr.mxu0 0.0
    %731 = vmatpush1.xpose.msra.mxu0 0.0
    %732 = vmatprep.subr.mxu0 0.0
    %733 = vmatpush1.xpose.msra.mxu0 0.0
    %734 = vmatprep.subr.mxu0 0.0
    %735 = vmatpush1.xpose.msra.mxu0 0.0
    %736 = vmatprep.subr.mxu0 0.0
    %737 = vmatpush1.xpose.msra.mxu0 0.0
    %738 = vmatprep.subr.mxu0 0.0
    %739 = vmatpush1.xpose.msra.mxu0 0.0
    %740 = vmatprep.subr.mxu0 0.0
    %741 = vmatpush1.xpose.msra.mxu0 0.0
    %742 = vmatprep.subr.mxu0 0.0
    %743 = vmatpush1.xpose.msra.mxu0 0.0
    %744 = vmatprep.subr.mxu0 0.0
    %745 = vmatpush1.xpose.msra.mxu0 0.0
    %746 = vmatprep.subr.mxu0 0.0
    %747 = vmatpush1.xpose.msra.mxu0 0.0
    %748 = vmatprep.subr.mxu0 0.0
    %749 = vmatpush1.xpose.msra.mxu0 0.0
    %750 = vmatprep.subr.mxu0 0.0
    %751 = vmatpush1.xpose.msra.mxu0 0.0
    %752 = vmatprep.subr.mxu0 0.0
    %753 = vmatpush1.xpose.msra.mxu0 0.0
    %754 = vmatprep.subr.mxu0 0.0
    %755 = vmatpush1.xpose.msra.mxu0 0.0
    %756 = vmatprep.subr.mxu0 0.0
    %757 = vmatpush1.xpose.msra.mxu0 0.0
    %758 = vmatprep.subr.mxu0 0.0
    %759 = vmatpush1.xpose.msra.mxu0 0.0
    %760 = vmatprep.mubr.f32.mxu0 0.0
    %761 = vmatmul.mubr.f32.gmra.mrb[0].mxu0 %v695
    %v762 = vpop.f32.mrb[0].mxu0
    %v763 = vadd.f32 0.0, %v762
    %v764 = vpop.f32.mrb[0].mxu0
    %765 = vdwg.mxu0
    %vm766 = vcmask 64512
    %767 = vst.msk [vmem:[#allocation3] sm:$0xff] %vm766, %v763
    %v768 = vlaneseq
    %v769 = vshrl.u32 %v768, 7
    %v770 = vlaneseq
    %v771 = vand.u32 %v770, 127
    %vm772 = vcmp.eq.s32.totalorder %v769, %v771
    %v773 = vsel %vm772, 1, 0
    %v774 = vcvt.s32.f32 %v773
    %v775 = vsel %vm766, %v763, -inf
    %776 = vmax.xlane.f32.xlu0 %v775
    %v777 = vpop.xlane.xlu0 %776
    %v778 = vsub.f32 %v763, %v777
    %v779 = vmul.f32 %v778, 1.442695
    %v780 = vpow.pop %v779
    %v781 = vsel %vm766, %v780, 0.0
    %782 = vadd.xlane.f32.xlu0 %v781
    %v783 = vpop.xlane.xlu0 %782
    %v784 = vlog2.pop %v783
    %v785 = vmul.f32 %v784, 0.6931472
    %v786 = vadd.f32 %v777, %v785
    %v787 = vmul.f32 %v763, %v774
    %v788 = vsel %vm766, %v787, 0.0
    %789 = vadd.xlane.f32.xlu0 %v788
    %v790 = vpop.xlane.xlu0 %789
    %v791 = vsub.f32 %v786, %v790
    %vm792 = vcmp.ne.s32.totalorder %v769, 0
    %v793 = vsel %vm792, 1, 0
    %v794 = vcvt.s32.f32 %v793
    %v795 = vmul.f32 %v791, %v794
    %vm796 = vcmask 7168
    %v797 = vsel %vm796, %v795, 0.0
    %798 = vadd.xlane.f32.xlu0 %v797
    %v799 = vpop.xlane.xlu0 %798
    %v800 = vrot.slane %v799, 4
    %v801 = vadd.f32 %v799, %v800
    %v802 = vrot.slane %v801, 2
    %v803 = vadd.f32 %v801, %v802
    %v804 = vrot.slane %v803, 1
    %v805 = vadd.f32 %v803, %v804
    %s806 = vtos %v805
    %v807 = vstv %s806
    %v808 = vsel %vm796, %v794, 0.0
    %809 = vadd.xlane.f32.xlu0 %v808
    %v810 = vpop.xlane.xlu0 %809
    %v811 = vrot.slane %v810, 4
    %v812 = vadd.f32 %v810, %v811
    %v813 = vrot.slane %v812, 2
    %v814 = vadd.f32 %v812, %v813
    %v815 = vrot.slane %v814, 1
    %v816 = vadd.f32 %v814, %v815
    %s817 = vtos %v816
    %v818 = vstv %s817
    %v819 = vmax.f32 %v818, 1.0
    %v820 = vrcp.pop %v819
    %v821 = vmul.f32 %v807, %v820
    %vm822 = vcmask 0
    %823 = vst.msk [vmem:[#allocation5] sm:$0x1] %vm822, %v821
    // Predicated region
    $region22: #{pointclipv2_zs_forward.1} parent=1 // pred_check
      _
    $region23: #{pointclipv2_zs_forward.1} parent=1 // pred_check_branch
      %825 = sbr.rel (0) target = $region25
    $region24: #{pointclipv2_zs_forward.1} parent=1 // pred_region
      %s827 = ssub.s32 128, 128
      %828 = vsyncadd [#allocation4], %s827
      %s830 = sshll.u32 [#allocation3], 4
      %s831 = int_to_ptr.vmem [resolvable:$true] %s830
      %833 = dma.vmem_to_hbm [thread:$0]  %s831, 128, %s5, [#allocation4]
    $region25: #{pointclipv2_zs_forward.1} parent=1 // pred_fallthru
      _
    // Predicated region
    $region26: #{pointclipv2_zs_forward.1} parent=1 // pred_check
      _
    $region27: #{pointclipv2_zs_forward.1} parent=1 // pred_check_branch
      %835 = sbr.rel (0) target = $region29
    $region28: #{pointclipv2_zs_forward.1} parent=1 // pred_region
      %s837 = ssub.s32 16, 16
      %838 = vsyncadd [#allocation6], %s837
      %s840 = sshll.u32 [#allocation5], 4
      %s841 = int_to_ptr.vmem [resolvable:$true] %s840
      %843 = dma.vmem_to_hbm [thread:$0]  %s841, 16, %s6, [#allocation6]
    $region29: #{pointclipv2_zs_forward.1} parent=1 // pred_fallthru
      _
    // Predicated region
    $region30: #{pointclipv2_zs_forward.1} parent=1 // pred_check
      _
    $region31: #{pointclipv2_zs_forward.1} parent=1 // pred_check_branch
      %845 = sbr.rel (0) target = $region33
    $region32: #{pointclipv2_zs_forward.1} parent=1 // pred_region
      %846 = dma.done [#allocation4], 128
    $region33: #{pointclipv2_zs_forward.1} parent=1 // pred_fallthru
      _
    // Predicated region
    $region34: #{pointclipv2_zs_forward.1} parent=1 // pred_check
      _
    $region35: #{pointclipv2_zs_forward.1} parent=1 // pred_check_branch
      %848 = sbr.rel (0) target = $region37
    $region36: #{pointclipv2_zs_forward.1} parent=1 // pred_region
      %849 = dma.done [#allocation6], 16
    $region37: #{pointclipv2_zs_forward.1} parent=1 // pred_fallthru
      _
    %850 = vsyncpa [#allocation4], 1
    %851 = vsyncpa [#allocation6], 1

</llo_original>
